<compile_context>
chip_gen: v6e
topology: v6e:2x2x1
jax: 0.10.0
libtpu: 0.0.40
codegen_flags: <defaults>
</compile_context>

<pallas_src>
import functools

import jax
import jax.numpy as jnp
from jax.experimental import pallas as pl
from jax.experimental.pallas import tpu as pltpu

IN_DIM = 512
HID_DIM = 256
EPS = 1e-20
BLOCK_B = 1024  # max batch tile: big enough to amortize per-step overhead, ~6 MiB VMEM


def _round_up(n, m):
    return ((n + m - 1) // m) * m


def _gumbel_encoder_kernel(x_ref, w1_ref, b1_ref, w2_ref, b2_ref, u_ref,
                           z_ref, soft_ref, *, inv_temp):
    # fc1 + relu: cast f32 -> bf16 in-kernel (VPU, hidden under DMA), f32 MXU accumulate.
    x_bf = x_ref[...].astype(jnp.bfloat16)
    w1_bf = w1_ref[...].astype(jnp.bfloat16)
    h1 = jnp.dot(x_bf, w1_bf, preferred_element_type=jnp.float32)
    h1 = jnp.maximum(h1 + b1_ref[...], 0.0)

    # fc2 + relu: (tb, 256) @ (256, K) -> (tb, K). K block == full last dim, so no
    # lane padding ever reaches HBM and all downstream EUP work is K lanes only.
    w2_bf = w2_ref[...].astype(jnp.bfloat16)
    q = jnp.dot(h1.astype(jnp.bfloat16), w2_bf, preferred_element_type=jnp.float32)
    q = jnp.maximum(q + b2_ref[...], 0.0)

    # gumbel noise from caller-provided uniform samples (f32)
    g = -jnp.log(-jnp.log(u_ref[...] + EPS) + EPS)

    # z = softmax((q + g) / temp, axis=-1)   (multiply by precomputed 1/temp)
    y = (q + g) * inv_temp
    y = y - jnp.max(y, axis=-1, keepdims=True)
    y_exp = jnp.exp(y)
    z_ref[...] = y_exp * pl.reciprocal(
        jnp.sum(y_exp, axis=-1, keepdims=True), approx=True)

    # soft = softmax(q, axis=-1)
    q_s = q - jnp.max(q, axis=-1, keepdims=True)
    q_exp = jnp.exp(q_s)
    soft_ref[...] = q_exp * pl.reciprocal(
        jnp.sum(q_exp, axis=-1, keepdims=True), approx=True)


def gumbel_encoder_forward(x, w1, b1, w2, b2, u, temp, block_b=BLOCK_B):
    """x: (B, 512) f32; u: (B, K) uniform f32. Returns (z, softmax_q), each (B, K) f32."""
    B = x.shape[0]
    K = w2.shape[1]

    # Batch tile: largest tile <= block_b, but with >= 2 grid steps when B > 8 so the
    # "parallel" axis actually splits across v7x's two TensorCores.
    if B <= 8:
        tb = _round_up(B, 8)
    else:
        tb = min(block_b, _round_up(-(-B // 2), 8))
    B_pad = _round_up(B, tb)

    if B_pad != B:
        # zero padding keeps every padded row finite (log(0+eps) is finite); rows are discarded.
        x = jnp.pad(x, ((0, B_pad - B), (0, 0)))
        u = jnp.pad(u, ((0, B_pad - B), (0, 0)))

    kernel = functools.partial(_gumbel_encoder_kernel, inv_temp=float(1.0 / temp))

    z, soft = pl.pallas_call(
        kernel,
        out_shape=(
            jax.ShapeDtypeStruct((B_pad, K), jnp.float32),
            jax.ShapeDtypeStruct((B_pad, K), jnp.float32),
        ),
        grid=(B_pad // tb,),
        in_specs=[
            pl.BlockSpec((tb, IN_DIM), lambda i: (i, 0)),        # x tile (f32, cast in-kernel)
            pl.BlockSpec((IN_DIM, HID_DIM), lambda i: (0, 0)),   # W1 (VMEM-resident)
            pl.BlockSpec((1, HID_DIM), lambda i: (0, 0)),        # b1 (resident)
            pl.BlockSpec((HID_DIM, K), lambda i: (0, 0)),        # W2 (resident, unpadded K)
            pl.BlockSpec((1, K), lambda i: (0, 0)),              # b2 (resident)
            pl.BlockSpec((tb, K), lambda i: (i, 0)),             # U tile
        ],
        out_specs=(
            pl.BlockSpec((tb, K), lambda i: (i, 0)),
            pl.BlockSpec((tb, K), lambda i: (i, 0)),
        ),
        compiler_params=pltpu.CompilerParams(
            dimension_semantics=("parallel",),
            vmem_limit_bytes=32 << 20,
        ),
    )(x, w1, b1, w2, b2, u)

    if B_pad != B:
        z, soft = z[:B], soft[:B]
    return z, soft


def init_params(key, categorical_dim):
    """Deterministic synthetic init matching nn.Linear(512,256), nn.Linear(256,K)."""
    k1, k2, k3, k4 = jax.random.split(key, 4)
    lim1 = 1.0 / jnp.sqrt(IN_DIM)
    lim2 = 1.0 / jnp.sqrt(HID_DIM)
    # stored as (in, out) == W.T of PyTorch's (out, in)
    w1 = jax.random.uniform(k1, (IN_DIM, HID_DIM), jnp.float32, -lim1, lim1)
    b1 = jax.random.uniform(k2, (1, HID_DIM), jnp.float32, -lim1, lim1)
    w2 = jax.random.uniform(k3, (HID_DIM, categorical_dim), jnp.float32, -lim2, lim2)
    b2 = jax.random.uniform(k4, (1, categorical_dim), jnp.float32, -lim2, lim2)
    return w1, b1, w2, b2


def reference_forward(x, w1, b1, w2, b2, u, temp):
    h1 = jnp.maximum(x @ w1 + b1, 0.0)
    q = jnp.maximum(h1 @ w2 + b2, 0.0)
    g = -jnp.log(-jnp.log(u + EPS) + EPS)
    z = jax.nn.softmax((q + g) / temp, axis=-1)
    soft = jax.nn.softmax(q, axis=-1)
    return z, soft


if __name__ == "__main__":
    key = jax.random.PRNGKey(0)
    k_param, k_x, k_u = jax.random.split(key, 3)

    batch = 16              # small demo; tile logic yields a 2-step parallel grid
    categorical_dim = 16
    temp = 0.5

    w1, b1, w2, b2 = init_params(k_param, categorical_dim)
    x = jax.random.normal(k_x, (batch, IN_DIM), jnp.float32)
    # uniform samples standing in for torch.rand inside sample_gumbel
    u = jax.random.uniform(k_u, (batch, categorical_dim), jnp.float32)

    z, soft = gumbel_encoder_forward(x, w1, b1, w2, b2, u, temp)
    jax.block_until_ready((z, soft))

    z_ref, soft_ref = reference_forward(x, w1, b1, w2, b2, u, temp)
    # bf16 matmul inputs + approx reciprocals => relaxed tolerance vs f32 reference
    assert z.shape == (batch, categorical_dim)
    assert soft.shape == (batch, categorical_dim)
    assert jnp.allclose(z, z_ref, atol=2e-2, rtol=2e-2)
    assert jnp.allclose(soft, soft_ref, atol=2e-2, rtol=2e-2)
    assert jnp.allclose(jnp.sum(z, axis=-1), 1.0, atol=1e-2)
    assert jnp.allclose(jnp.sum(soft, axis=-1), 1.0, atol=1e-2)

    print("KERNEL_OK")
</pallas_src>

<mosaic_0001>
module attributes {stable_mosaic.version = 11 : i64} {
  func.func @_gumbel_encoder_kernel(%arg0: i32, %arg1: memref<8x512xf32, #tpu.memory_space<vmem>>, %arg2: memref<512x256xf32, #tpu.memory_space<vmem>>, %arg3: memref<1x256xf32, #tpu.memory_space<vmem>>, %arg4: memref<256x16xf32, #tpu.memory_space<vmem>>, %arg5: memref<1x16xf32, #tpu.memory_space<vmem>>, %arg6: memref<8x16xf32, #tpu.memory_space<vmem>>, %arg7: memref<8x16xf32, #tpu.memory_space<vmem>>, %arg8: memref<8x16xf32, #tpu.memory_space<vmem>>) attributes {dimension_semantics = [#tpu.dimension_semantics<parallel>], iteration_bounds = array<i64: 2>, scalar_prefetch = 0 : i64, scratch_operands = 0 : i64, tpu.core_type = #tpu.core_type<tc>, window_params = [{transform_indices = @transform_0, window_bounds = array<i64: 8, 512>}, {pipeline_mode = #tpu.pipeline_mode<synchronous>, transform_indices = @transform_1, window_bounds = array<i64: 512, 256>}, {pipeline_mode = #tpu.pipeline_mode<synchronous>, transform_indices = @transform_2, window_bounds = array<i64: 1, 256>}, {pipeline_mode = #tpu.pipeline_mode<synchronous>, transform_indices = @transform_3, window_bounds = array<i64: 256, 16>}, {pipeline_mode = #tpu.pipeline_mode<synchronous>, transform_indices = @transform_4, window_bounds = array<i64: 1, 16>}, {transform_indices = @transform_5, window_bounds = array<i64: 8, 16>}, {transform_indices = @transform_6, window_bounds = array<i64: 8, 16>}, {transform_indices = @transform_7, window_bounds = array<i64: 8, 16>}]} {
    %c0 = arith.constant 0 : index
    %c0_0 = arith.constant 0 : index
    %0 = vector.load %arg1[%c0, %c0_0] : memref<8x512xf32, #tpu.memory_space<vmem>>, vector<8x512xf32>
    %1 = arith.truncf %0 : vector<8x512xf32> to vector<8x512xbf16>
    %c0_1 = arith.constant 0 : index
    %c0_2 = arith.constant 0 : index
    %2 = vector.load %arg2[%c0_1, %c0_2] : memref<512x256xf32, #tpu.memory_space<vmem>>, vector<512x256xf32>
    %3 = arith.truncf %2 : vector<512x256xf32> to vector<512x256xbf16>
    %cst = arith.constant dense<0.000000e+00> : vector<8x256xf32>
    %4 = tpu.matmul %1, %3, %cst {dimension_numbers = #tpu.dot_dimension_numbers<[1], [0], [0], [1], [0, 0, 1, 1], [], []>} : vector<8x512xbf16>, vector<512x256xbf16>, vector<8x256xf32> -> vector<8x256xf32>
    %c0_3 = arith.constant 0 : index
    %c0_4 = arith.constant 0 : index
    %5 = vector.load %arg3[%c0_3, %c0_4] : memref<1x256xf32, #tpu.memory_space<vmem>>, vector<1x256xf32>
    %6 = vector.broadcast %5 : vector<1x256xf32> to vector<8x256xf32>
    %7 = arith.addf %4, %6 : vector<8x256xf32>
    %cst_5 = arith.constant 0.000000e+00 : f32
    %8 = vector.broadcast %cst_5 : f32 to vector<8x256xf32>
    %9 = arith.maximumf %7, %8 : vector<8x256xf32>
    %c0_6 = arith.constant 0 : index
    %c0_7 = arith.constant 0 : index
    %10 = vector.load %arg4[%c0_6, %c0_7] : memref<256x16xf32, #tpu.memory_space<vmem>>, vector<256x16xf32>
    %11 = arith.truncf %10 : vector<256x16xf32> to vector<256x16xbf16>
    %12 = arith.truncf %9 : vector<8x256xf32> to vector<8x256xbf16>
    %cst_8 = arith.constant dense<0.000000e+00> : vector<8x16xf32>
    %13 = tpu.matmul %12, %11, %cst_8 {dimension_numbers = #tpu.dot_dimension_numbers<[1], [0], [0], [1], [0, 0, 1, 1], [], []>} : vector<8x256xbf16>, vector<256x16xbf16>, vector<8x16xf32> -> vector<8x16xf32>
    %c0_9 = arith.constant 0 : index
    %c0_10 = arith.constant 0 : index
    %14 = vector.load %arg5[%c0_9, %c0_10] : memref<1x16xf32, #tpu.memory_space<vmem>>, vector<1x16xf32>
    %15 = vector.broadcast %14 : vector<1x16xf32> to vector<8x16xf32>
    %16 = arith.addf %13, %15 : vector<8x16xf32>
    %cst_11 = arith.constant 0.000000e+00 : f32
    %17 = vector.broadcast %cst_11 : f32 to vector<8x16xf32>
    %18 = arith.maximumf %16, %17 : vector<8x16xf32>
    %c0_12 = arith.constant 0 : index
    %c0_13 = arith.constant 0 : index
    %19 = vector.load %arg6[%c0_12, %c0_13] : memref<8x16xf32, #tpu.memory_space<vmem>>, vector<8x16xf32>
    %cst_14 = arith.constant 9.99999968E-21 : f32
    %20 = vector.broadcast %cst_14 : f32 to vector<8x16xf32>
    %21 = arith.addf %19, %20 : vector<8x16xf32>
    %22 = math.log %21 : vector<8x16xf32>
    %cst_15 = arith.constant 0.000000e+00 : f32
    %23 = vector.broadcast %cst_15 : f32 to vector<8x16xf32>
    %24 = arith.subf %23, %22 : vector<8x16xf32>
    %cst_16 = arith.constant 9.99999968E-21 : f32
    %25 = vector.broadcast %cst_16 : f32 to vector<8x16xf32>
    %26 = arith.addf %24, %25 : vector<8x16xf32>
    %27 = math.log %26 : vector<8x16xf32>
    %cst_17 = arith.constant 0.000000e+00 : f32
    %28 = vector.broadcast %cst_17 : f32 to vector<8x16xf32>
    %29 = arith.subf %28, %27 : vector<8x16xf32>
    %30 = arith.addf %18, %29 : vector<8x16xf32>
    %cst_18 = arith.constant 2.000000e+00 : f32
    %31 = vector.broadcast %cst_18 : f32 to vector<8x16xf32>
    %32 = arith.mulf %30, %31 : vector<8x16xf32>
    %cst_19 = arith.constant dense<0xFF800000> : vector<8xf32>
    %33 = vector.multi_reduction <maximumf>, %32, %cst_19 [1] : vector<8x16xf32> to vector<8xf32>
    %34 = vector.shape_cast %33 : vector<8xf32> to vector<8x1xf32>
    %35 = vector.broadcast %34 : vector<8x1xf32> to vector<8x16xf32>
    %36 = arith.subf %32, %35 : vector<8x16xf32>
    %37 = math.exp %36 : vector<8x16xf32>
    %cst_20 = arith.constant dense<0.000000e+00> : vector<8xf32>
    %38 = vector.multi_reduction <add>, %37, %cst_20 [1] : vector<8x16xf32> to vector<8xf32>
    %39 = vector.shape_cast %38 : vector<8xf32> to vector<8x1xf32>
    %40 = tpu.reciprocal %39 {approx = true} : vector<8x1xf32> -> vector<8x1xf32>
    %41 = vector.broadcast %40 : vector<8x1xf32> to vector<8x16xf32>
    %42 = arith.mulf %37, %41 : vector<8x16xf32>
    %c0_21 = arith.constant 0 : index
    %c0_22 = arith.constant 0 : index
    %43 = vector.load %arg7[%c0_21, %c0_22] : memref<8x16xf32, #tpu.memory_space<vmem>>, vector<8x16xf32>
    tpu.vector_store %arg7[%c0_21, %c0_22], %42 {strides = array<i32>} : memref<8x16xf32, #tpu.memory_space<vmem>>, vector<8x16xf32>,
    %cst_23 = arith.constant dense<0xFF800000> : vector<8xf32>
    %44 = vector.multi_reduction <maximumf>, %18, %cst_23 [1] : vector<8x16xf32> to vector<8xf32>
    %45 = vector.shape_cast %44 : vector<8xf32> to vector<8x1xf32>
    %46 = vector.broadcast %45 : vector<8x1xf32> to vector<8x16xf32>
    %47 = arith.subf %18, %46 : vector<8x16xf32>
    %48 = math.exp %47 : vector<8x16xf32>
    %cst_24 = arith.constant dense<0.000000e+00> : vector<8xf32>
    %49 = vector.multi_reduction <add>, %48, %cst_24 [1] : vector<8x16xf32> to vector<8xf32>
    %50 = vector.shape_cast %49 : vector<8xf32> to vector<8x1xf32>
    %51 = tpu.reciprocal %50 {approx = true} : vector<8x1xf32> -> vector<8x1xf32>
    %52 = vector.broadcast %51 : vector<8x1xf32> to vector<8x16xf32>
    %53 = arith.mulf %48, %52 : vector<8x16xf32>
    %c0_25 = arith.constant 0 : index
    %c0_26 = arith.constant 0 : index
    %54 = vector.load %arg8[%c0_25, %c0_26] : memref<8x16xf32, #tpu.memory_space<vmem>>, vector<8x16xf32>
    tpu.vector_store %arg8[%c0_25, %c0_26], %53 {strides = array<i32>} : memref<8x16xf32, #tpu.memory_space<vmem>>, vector<8x16xf32>,
    return
  }
  func.func @transform_0(%arg0: i32) -> (i32, i32) {
    %c0_i32 = arith.constant 0 : i32
    %c0_i32_0 = arith.constant 0 : i32
    return %arg0, %c0_i32 : i32, i32
  }
  func.func @transform_1(%arg0: i32) -> (i32, i32) {
    %c0_i32 = arith.constant 0 : i32
    %c0_i32_0 = arith.constant 0 : i32
    %c0_i32_1 = arith.constant 0 : i32
    return %c0_i32, %c0_i32_0 : i32, i32
  }
  func.func @transform_2(%arg0: i32) -> (i32, i32) {
    %c0_i32 = arith.constant 0 : i32
    %c0_i32_0 = arith.constant 0 : i32
    %c0_i32_1 = arith.constant 0 : i32
    return %c0_i32, %c0_i32_0 : i32, i32
  }
  func.func @transform_3(%arg0: i32) -> (i32, i32) {
    %c0_i32 = arith.constant 0 : i32
    %c0_i32_0 = arith.constant 0 : i32
    %c0_i32_1 = arith.constant 0 : i32
    return %c0_i32, %c0_i32_0 : i32, i32
  }
  func.func @transform_4(%arg0: i32) -> (i32, i32) {
    %c0_i32 = arith.constant 0 : i32
    %c0_i32_0 = arith.constant 0 : i32
    %c0_i32_1 = arith.constant 0 : i32
    return %c0_i32, %c0_i32_0 : i32, i32
  }
  func.func @transform_5(%arg0: i32) -> (i32, i32) {
    %c0_i32 = arith.constant 0 : i32
    %c0_i32_0 = arith.constant 0 : i32
    return %arg0, %c0_i32 : i32, i32
  }
  func.func @transform_6(%arg0: i32) -> (i32, i32) {
    %c0_i32 = arith.constant 0 : i32
    %c0_i32_0 = arith.constant 0 : i32
    return %arg0, %c0_i32 : i32, i32
  }
  func.func @transform_7(%arg0: i32) -> (i32, i32) {
    %c0_i32 = arith.constant 0 : i32
    %c0_i32_0 = arith.constant 0 : i32
    return %arg0, %c0_i32 : i32, i32
  }
}

</mosaic_0001>

<llo_original>
// kernel: tpu_custom_call.1
$region0: #{tpu_custom_call.1}
  #allocation0 [shape = 'u32[]', space=smem, size = 0x4, offset = 0x4, fixed_abs, tag = 'smem constant byte address 0x4 - core index']
  #allocation1 [shape = 'u32[144,128]{1,0:T(1,128)}', space=vmem, size = 0x12000, scoped, tag = 'internal scratch']
  %s0 = inlined_call_operand.vmem [shape: f32[16,512], index: 0, kind: input, shape index: {}]
  %s1 = inlined_call_operand.hbm [shape: f32[512,256], index: 1, kind: input, shape index: {}]
  %s2 = inlined_call_operand.vmem [shape: f32[1,256], index: 2, kind: input, shape index: {}]
  %s3 = inlined_call_operand.vmem [shape: f32[256,16], index: 3, kind: input, shape index: {}]
  %s4 = inlined_call_operand.vmem [shape: f32[1,16], index: 4, kind: input, shape index: {}]
  %s5 = inlined_call_operand.vmem [shape: f32[16,16], index: 5, kind: input, shape index: {}]
  %s6 = inlined_call_operand.hbm [shape: f32[16,16], index: 6, kind: output, shape index: {0}]
  %s7 = inlined_call_operand.hbm [shape: f32[16,16], index: 7, kind: output, shape index: {1}]
  %8 = xla_tuple %s6, %s7
  %s9 = sld [smem:[#allocation0]]
  $region69: #{tpu_custom_call.1} parent=0
    _
  %s11 = ssub.s32 1, %s9
  %s12 = scalar_select 0, %s11, %s9
  $region1: #{tpu_custom_call.1} parent=0
    #allocation2 [shape = 'u8[524288]{0}', space=vmem, size = 0x80000, scoped, tag = 'input window, operand 1, single buffered']
    #allocation3 [shape = 's32[2]{0}', space=sflag, size = 0x8, scoped, tag = 'scoped memory for tpu_custom_call.1']
    #allocation4 [shape = 's32[2]{0}', space=sflag, size = 0x8, scoped, tag = 'scoped memory for tpu_custom_call.1']
    #allocation5 [shape = 'u8[8192]{0}', space=vmem, size = 0x2000, scoped, tag = 'output window, operand 0']
    #allocation6 [shape = 'u8[8192]{0}', space=vmem, size = 0x2000, scoped, tag = 'output window, operand 1']
    #allocation7 [shape = 's32[2]{0}', space=sflag, size = 0x8, scoped, tag = 'scoped memory for tpu_custom_call.1']
    %13 = vsyncpa [#allocation3], 0
    %14 = vsyncpa [#allocation4], 0
    %s15 = scalar_lea.sflag [#allocation4], 1
    %16 = vsyncpa %s15, 0
    %17 = vsyncpa [#allocation7], 0
    %s18 = scalar_lea.sflag [#allocation7], 1
    %19 = vsyncpa %s18, 0
    loop: start=0, step=1, limit=4
    $region2: #{tpu_custom_call.1} parent=1 // loop_pre_header
      _
    $region3: #{tpu_custom_call.1} parent=1 // loop_header
      %s21 = sphi 0, %s25
      %p22 = scmp.ge.s32.totalorder %s21, 4
      %s31 = sphi 0, %s33
      %s34 = sphi 0, %s31
      %s35 = sphi 0, %s34
      %s51 = sphi 0, %s35
      %s55 = sphi 0, %s55
      %s57 = sphi 0, %s55
      %s58 = sphi 0, %s57
      %s72 = sphi 0, %s58
      %s76 = sphi 0, %s76
      %s78 = sphi 0, %s76
      %s79 = sphi 0, %s78
      %s93 = sphi 0, %s79
      %s97 = sphi 0, %s97
      %s99 = sphi 0, %s97
      %s100 = sphi 0, %s99
      %s114 = sphi 0, %s100
      %s118 = sphi 0, %s118
      %s120 = sphi 0, %s118
      %s121 = sphi 0, %s120
      %s135 = sphi 0, %s121
      %s141 = sphi 0, %s143
      %s144 = sphi 0, %s141
      %s145 = sphi 0, %s144
      %s161 = sphi 0, %s145
      %s167 = sphi 0, %s169
      %s170 = sphi 0, %s167
      %s171 = sphi 0, %s170
      %s187 = sphi 0, %s171
      %s193 = sphi 0, %s195
      %s196 = sphi 0, %s193
      %s197 = sphi 0, %s196
      %s213 = sphi 0, %s197
    $region4: #{tpu_custom_call.1} parent=1 // loop_header_branch
      %24 = sbr.rel (%p22) target = $region8
    $region5: #{tpu_custom_call.1} parent=1 // loop_body
      %s26 = ssub.s32 %s21, 1
      %s27 = ssub.s32 %s21, 2
      %s28 = sadd.s32 %s21, 1
      %s29 = ssub.s32 %s21, %s28
      %p30 = scmp.eq.s32.totalorder %s29, 0
      %s32 = sadd.s32 %s31, 1
      %s33 = scalar_select %p30, %s31, %s32
      %p36 = pneg %p30
      %p37 = scmp.eq.s32.totalorder %s21, 1
      %p38 = por %p36, %p37
      %p39 = scmp.ne.s32.totalorder %s31, %s34
      %p40 = scmp.eq.s32.totalorder %s21, 0
      %p41 = por %p39, %p40
      %p42 = scmp.ne.s32.totalorder %s31, %s34
      %p43 = scmp.eq.s32.totalorder %s26, 1
      %p44 = por %p42, %p43
      %p45 = scmp.ne.s32.totalorder %s34, %s35
      %p46 = scmp.eq.s32.totalorder %s26, 0
      %p47 = por %p45, %p46
      %p48 = scmp.ne.s32.totalorder %s34, %s35
      %p49 = scmp.eq.s32.totalorder %s27, 1
      %p50 = por %p48, %p49
      %p52 = scmp.ne.s32.totalorder %s35, %s51
      %p53 = scmp.eq.s32.totalorder %s27, 0
      %p54 = por %p52, %p53
      %s56 = sadd.s32 %s55, 1
      %p59 = scmp.eq.s32.totalorder %s21, 1
      %p60 = scmp.ne.s32.totalorder %s55, %s57
      %p61 = scmp.eq.s32.totalorder %s21, 0
      %p62 = por %p60, %p61
      %p63 = scmp.ne.s32.totalorder %s55, %s57
      %p64 = scmp.eq.s32.totalorder %s26, 1
      %p65 = por %p63, %p64
      %p66 = scmp.ne.s32.totalorder %s57, %s58
      %p67 = scmp.eq.s32.totalorder %s26, 0
      %p68 = por %p66, %p67
      %p69 = scmp.ne.s32.totalorder %s57, %s58
      %p70 = scmp.eq.s32.totalorder %s27, 1
      %p71 = por %p69, %p70
      %p73 = scmp.ne.s32.totalorder %s58, %s72
      %p74 = scmp.eq.s32.totalorder %s27, 0
      %p75 = por %p73, %p74
      %s77 = sadd.s32 %s76, 1
      %p80 = scmp.eq.s32.totalorder %s21, 1
      %p81 = scmp.ne.s32.totalorder %s76, %s78
      %p82 = scmp.eq.s32.totalorder %s21, 0
      %p83 = por %p81, %p82
      %p84 = scmp.ne.s32.totalorder %s76, %s78
      %p85 = scmp.eq.s32.totalorder %s26, 1
      %p86 = por %p84, %p85
      %p87 = scmp.ne.s32.totalorder %s78, %s79
      %p88 = scmp.eq.s32.totalorder %s26, 0
      %p89 = por %p87, %p88
      %p90 = scmp.ne.s32.totalorder %s78, %s79
      %p91 = scmp.eq.s32.totalorder %s27, 1
      %p92 = por %p90, %p91
      %p94 = scmp.ne.s32.totalorder %s79, %s93
      %p95 = scmp.eq.s32.totalorder %s27, 0
      %p96 = por %p94, %p95
      %s98 = sadd.s32 %s97, 1
      %p101 = scmp.eq.s32.totalorder %s21, 1
      %p102 = scmp.ne.s32.totalorder %s97, %s99
      %p103 = scmp.eq.s32.totalorder %s21, 0
      %p104 = por %p102, %p103
      %p105 = scmp.ne.s32.totalorder %s97, %s99
      %p106 = scmp.eq.s32.totalorder %s26, 1
      %p107 = por %p105, %p106
      %p108 = scmp.ne.s32.totalorder %s99, %s100
      %p109 = scmp.eq.s32.totalorder %s26, 0
      %p110 = por %p108, %p109
      %p111 = scmp.ne.s32.totalorder %s99, %s100
      %p112 = scmp.eq.s32.totalorder %s27, 1
      %p113 = por %p111, %p112
      %p115 = scmp.ne.s32.totalorder %s100, %s114
      %p116 = scmp.eq.s32.totalorder %s27, 0
      %p117 = por %p115, %p116
      %s119 = sadd.s32 %s118, 1
      %p122 = scmp.eq.s32.totalorder %s21, 1
      %p123 = scmp.ne.s32.totalorder %s118, %s120
      %p124 = scmp.eq.s32.totalorder %s21, 0
      %p125 = por %p123, %p124
      %p126 = scmp.ne.s32.totalorder %s118, %s120
      %p127 = scmp.eq.s32.totalorder %s26, 1
      %p128 = por %p126, %p127
      %p129 = scmp.ne.s32.totalorder %s120, %s121
      %p130 = scmp.eq.s32.totalorder %s26, 0
      %p131 = por %p129, %p130
      %p132 = scmp.ne.s32.totalorder %s120, %s121
      %p133 = scmp.eq.s32.totalorder %s27, 1
      %p134 = por %p132, %p133
      %p136 = scmp.ne.s32.totalorder %s121, %s135
      %p137 = scmp.eq.s32.totalorder %s27, 0
      %p138 = por %p136, %p137
      %s139 = ssub.s32 %s21, %s28
      %p140 = scmp.eq.s32.totalorder %s139, 0
      %s142 = sadd.s32 %s141, 1
      %s143 = scalar_select %p140, %s141, %s142
      %p146 = pneg %p140
      %p147 = scmp.eq.s32.totalorder %s21, 1
      %p148 = por %p146, %p147
      %p149 = scmp.ne.s32.totalorder %s141, %s144
      %p150 = scmp.eq.s32.totalorder %s21, 0
      %p151 = por %p149, %p150
      %p152 = scmp.ne.s32.totalorder %s141, %s144
      %p153 = scmp.eq.s32.totalorder %s26, 1
      %p154 = por %p152, %p153
      %p155 = scmp.ne.s32.totalorder %s144, %s145
      %p156 = scmp.eq.s32.totalorder %s26, 0
      %p157 = por %p155, %p156
      %p158 = scmp.ne.s32.totalorder %s144, %s145
      %p159 = scmp.eq.s32.totalorder %s27, 1
      %p160 = por %p158, %p159
      %p162 = scmp.ne.s32.totalorder %s145, %s161
      %p163 = scmp.eq.s32.totalorder %s27, 0
      %p164 = por %p162, %p163
      %s165 = ssub.s32 %s21, %s28
      %p166 = scmp.eq.s32.totalorder %s165, 0
      %s168 = sadd.s32 %s167, 1
      %s169 = scalar_select %p166, %s167, %s168
      %p172 = pneg %p166
      %p173 = scmp.eq.s32.totalorder %s21, 1
      %p174 = por %p172, %p173
      %p175 = scmp.ne.s32.totalorder %s167, %s170
      %p176 = scmp.eq.s32.totalorder %s21, 0
      %p177 = por %p175, %p176
      %p178 = scmp.ne.s32.totalorder %s167, %s170
      %p179 = scmp.eq.s32.totalorder %s26, 1
      %p180 = por %p178, %p179
      %p181 = scmp.ne.s32.totalorder %s170, %s171
      %p182 = scmp.eq.s32.totalorder %s26, 0
      %p183 = por %p181, %p182
      %p184 = scmp.ne.s32.totalorder %s170, %s171
      %p185 = scmp.eq.s32.totalorder %s27, 1
      %p186 = por %p184, %p185
      %p188 = scmp.ne.s32.totalorder %s171, %s187
      %p189 = scmp.eq.s32.totalorder %s27, 0
      %p190 = por %p188, %p189
      %s191 = ssub.s32 %s21, %s28
      %p192 = scmp.eq.s32.totalorder %s191, 0
      %s194 = sadd.s32 %s193, 1
      %s195 = scalar_select %p192, %s193, %s194
      %p198 = pneg %p192
      %p199 = scmp.eq.s32.totalorder %s21, 1
      %p200 = por %p198, %p199
      %p201 = scmp.ne.s32.totalorder %s193, %s196
      %p202 = scmp.eq.s32.totalorder %s21, 0
      %p203 = por %p201, %p202
      %p204 = scmp.ne.s32.totalorder %s193, %s196
      %p205 = scmp.eq.s32.totalorder %s26, 1
      %p206 = por %p204, %p205
      %p207 = scmp.ne.s32.totalorder %s196, %s197
      %p208 = scmp.eq.s32.totalorder %s26, 0
      %p209 = por %p207, %p208
      %p210 = scmp.ne.s32.totalorder %s196, %s197
      %p211 = scmp.eq.s32.totalorder %s27, 1
      %p212 = por %p210, %p211
      %p214 = scmp.ne.s32.totalorder %s197, %s213
      %p215 = scmp.eq.s32.totalorder %s27, 0
      %p216 = por %p214, %p215
      %p217 = scmp.le.s32.totalorder 1, %s21
      %p218 = scmp.lt.s32.totalorder %s21, 3
      %p219 = pnand %p217, %p218
      %p220 = pneg %p219
      // Predicated region
      $region9: #{tpu_custom_call.1} parent=5 // pred_check
        _
      $region10: #{tpu_custom_call.1} parent=5 // pred_check_branch
        %222 = sbr.rel (%p219) target = $region12
      $region11: #{tpu_custom_call.1} parent=5 // pred_region
        %s223 = ssub.s32 %s21, 1
        // Predicated region
        $region13: #{tpu_custom_call.1} parent=11 // pred_check
          %p224 = pneg %p68
        $region14: #{tpu_custom_call.1} parent=11 // pred_check_branch
          %226 = sbr.rel (%p224) target = $region16
        $region15: #{tpu_custom_call.1} parent=11 // pred_region
          %s228 = ssub.s32 16384, 16384
          %229 = vsyncadd [#allocation3], %s228
          %s230 = sshll.u32 [#allocation2], 4
          %s231 = int_to_ptr.vmem [resolvable:$true] %s230
          %236 = dma.hbm_to_vmem [thread:$0]  %s1, 16384, %s231, [#allocation3], 256, 256, 16
        $region16: #{tpu_custom_call.1} parent=11 // pred_fallthru
          _
        // Predicated region
        $region17: #{tpu_custom_call.1} parent=11 // pred_check
          %p237 = pneg %p89
        $region18: #{tpu_custom_call.1} parent=11 // pred_check_branch
          %239 = sbr.rel (%p237) target = $region20
        $region19: #{tpu_custom_call.1} parent=11 // pred_region
          _
        $region20: #{tpu_custom_call.1} parent=11 // pred_fallthru
          _
        // Predicated region
        $region21: #{tpu_custom_call.1} parent=11 // pred_check
          %p240 = pneg %p110
        $region22: #{tpu_custom_call.1} parent=11 // pred_check_branch
          %242 = sbr.rel (%p240) target = $region24
        $region23: #{tpu_custom_call.1} parent=11 // pred_region
          _
        $region24: #{tpu_custom_call.1} parent=11 // pred_fallthru
          _
        // Predicated region
        $region25: #{tpu_custom_call.1} parent=11 // pred_check
          %p243 = pneg %p131
        $region26: #{tpu_custom_call.1} parent=11 // pred_check_branch
          %245 = sbr.rel (%p243) target = $region28
        $region27: #{tpu_custom_call.1} parent=11 // pred_region
          _
        $region28: #{tpu_custom_call.1} parent=11 // pred_fallthru
          _
      $region12: #{tpu_custom_call.1} parent=5 // pred_fallthru
        _
      %p246 = scmp.lt.s32.totalorder %s21, 2
      // Predicated region
      $region29: #{tpu_custom_call.1} parent=5 // pred_check
        %p247 = pneg %p246
      $region30: #{tpu_custom_call.1} parent=5 // pred_check_branch
        %249 = sbr.rel (%p247) target = $region32
      $region31: #{tpu_custom_call.1} parent=5 // pred_region
        // Predicated region
        $region33: #{tpu_custom_call.1} parent=31 // pred_check
          %p250 = pneg %p41
        $region34: #{tpu_custom_call.1} parent=31 // pred_check_branch
          %252 = sbr.rel (%p250) target = $region36
        $region35: #{tpu_custom_call.1} parent=31 // pred_region
          %p253 = scmp.lt.s32.totalorder %s21, 1
          %s254 = scalar_select %p253, %s21, 1
          %s255 = smul.addr %s254, 4
          %s256 = smul.addr %s255, 8
          %s257 = scalar_lea.vmem %s0, %s256
        $region36: #{tpu_custom_call.1} parent=31 // pred_fallthru
          _
        // Predicated region
        $region37: #{tpu_custom_call.1} parent=31 // pred_check
          %p258 = pneg %p151
        $region38: #{tpu_custom_call.1} parent=31 // pred_check_branch
          %260 = sbr.rel (%p258) target = $region40
        $region39: #{tpu_custom_call.1} parent=31 // pred_region
          %p261 = scmp.lt.s32.totalorder %s21, 1
          %s262 = scalar_select %p261, %s21, 1
          %s263 = smul.addr %s262, 8
          %s264 = scalar_lea.vmem %s5, %s263
        $region40: #{tpu_custom_call.1} parent=31 // pred_fallthru
          _
      $region32: #{tpu_custom_call.1} parent=5 // pred_fallthru
        _
      %p265 = scmp.le.s32.totalorder 1, %s21
      %p266 = scmp.lt.s32.totalorder %s21, 3
      %p267 = pnand %p265, %p266
      %p268 = pneg %p267
      // Predicated region
      $region41: #{tpu_custom_call.1} parent=5 // pred_check
        _
      $region42: #{tpu_custom_call.1} parent=5 // pred_check_branch
        %270 = sbr.rel (%p267) target = $region44
      $region43: #{tpu_custom_call.1} parent=5 // pred_region
        %s271 = ssub.s32 %s21, 1
        // Predicated region
        $region45: #{tpu_custom_call.1} parent=43 // pred_check
          %p272 = pneg %p68
        $region46: #{tpu_custom_call.1} parent=43 // pred_check_branch
          %274 = sbr.rel (%p272) target = $region48
        $region47: #{tpu_custom_call.1} parent=43 // pred_region
          %275 = dma.done [#allocation3], 16384
        $region48: #{tpu_custom_call.1} parent=43 // pred_fallthru
          _
        %p276 = scmp.lt.s32.totalorder %s26, 1
        %s277 = scalar_select %p276, %s26, 1
        %s278 = smul.addr %s277, 4
        %s279 = smul.addr %s278, 8
        %s280 = scalar_lea.vmem %s0, %s279
        %p281 = pneg %p47
        %p282 = pneg %p44
        %p283 = pneg %p68
        %p284 = pneg %p65
        %p285 = pneg %p89
        %p286 = pneg %p86
        %p287 = pneg %p110
        %p288 = pneg %p107
        %p289 = pneg %p131
        %p290 = pneg %p128
        %p291 = scmp.lt.s32.totalorder %s26, 1
        %s292 = scalar_select %p291, %s26, 1
        %s293 = smul.addr %s292, 8
        %s294 = scalar_lea.vmem %s5, %s293
        %p295 = pneg %p157
        %p296 = pneg %p154
        %p297 = pneg %p183
        %p298 = pneg %p180
        %s299 = sand.u32 %s170, 1
        %s300 = scalar_lea.sflag [#allocation4], %s299
        %s301 = sand.u32 %s170, 1
        %s302 = smul.addr %s301, 8
        %s303 = scalar_lea.vmem [#allocation5], %s302
        %p304 = pneg %p209
        %p305 = pneg %p206
        %s306 = sand.u32 %s196, 1
        %s307 = scalar_lea.sflag [#allocation7], %s306
        %s308 = sand.u32 %s196, 1
        %s309 = smul.addr %s308, 8
        %s310 = scalar_lea.vmem [#allocation6], %s309
        %p311 = scmp.lt.s32.totalorder %s26, 1
        %s312 = scalar_select %p311, %s26, 1
        %s313 = smul.addr %s312, 4
        %s314 = smul.addr %s313, 8
        %s315 = scalar_lea.vmem %s0, %s314
        %p316 = scmp.lt.s32.totalorder %s26, 1
        %s317 = scalar_select %p316, %s26, 1
        %s318 = smul.addr %s317, 8
        %s319 = scalar_lea.vmem %s5, %s318
        %v321 = vld [vmem:[%s315] sm:$0xff]
        %v322 = vld [vmem:[%s315 + $0x8] sm:$0xff]
        %v323 = vld [vmem:[%s315 + $0x10] sm:$0xff]
        %v324 = vld [vmem:[%s315 + $0x18] sm:$0xff]
        %v325 = vpack.c.bf16 %v321, %v321
        %v326 = vpack.c.bf16 %v322, %v322
        %v327 = vpack.c.bf16 %v323, %v323
        %v328 = vpack.c.bf16 %v324, %v324
        %v329 = vld [vmem:[#allocation2] sm:$0xff]
        %v330 = vld [vmem:[#allocation2 + $0x8] sm:$0xff]
        %v331 = vld [vmem:[#allocation2 + $0x10] sm:$0xff]
        %v332 = vld [vmem:[#allocation2 + $0x18] sm:$0xff]
        %v333 = vld [vmem:[#allocation2 + $0x20] sm:$0xff]
        %v334 = vld [vmem:[#allocation2 + $0x28] sm:$0xff]
        %v335 = vld [vmem:[#allocation2 + $0x30] sm:$0xff]
        %v336 = vld [vmem:[#allocation2 + $0x38] sm:$0xff]
        %v337 = vld [vmem:[#allocation2 + $0x40] sm:$0xff]
        %v338 = vld [vmem:[#allocation2 + $0x48] sm:$0xff]
        %v339 = vld [vmem:[#allocation2 + $0x50] sm:$0xff]
        %v340 = vld [vmem:[#allocation2 + $0x58] sm:$0xff]
        %v341 = vld [vmem:[#allocation2 + $0x60] sm:$0xff]
        %v342 = vld [vmem:[#allocation2 + $0x68] sm:$0xff]
        %v343 = vld [vmem:[#allocation2 + $0x70] sm:$0xff]
        %v344 = vld [vmem:[#allocation2 + $0x78] sm:$0xff]
        %v345 = vld [vmem:[#allocation2 + $0x80] sm:$0xff]
        %v346 = vld [vmem:[#allocation2 + $0x88] sm:$0xff]
        %v347 = vld [vmem:[#allocation2 + $0x90] sm:$0xff]
        %v348 = vld [vmem:[#allocation2 + $0x98] sm:$0xff]
        %v349 = vld [vmem:[#allocation2 + $0xa0] sm:$0xff]
        %v350 = vld [vmem:[#allocation2 + $0xa8] sm:$0xff]
        %v351 = vld [vmem:[#allocation2 + $0xb0] sm:$0xff]
        %v352 = vld [vmem:[#allocation2 + $0xb8] sm:$0xff]
        %v353 = vld [vmem:[#allocation2 + $0xc0] sm:$0xff]
        %v354 = vld [vmem:[#allocation2 + $0xc8] sm:$0xff]
        %v355 = vld [vmem:[#allocation2 + $0xd0] sm:$0xff]
        %v356 = vld [vmem:[#allocation2 + $0xd8] sm:$0xff]
        %v357 = vld [vmem:[#allocation2 + $0xe0] sm:$0xff]
        %v358 = vld [vmem:[#allocation2 + $0xe8] sm:$0xff]
        %v359 = vld [vmem:[#allocation2 + $0xf0] sm:$0xff]
        %v360 = vld [vmem:[#allocation2 + $0xf8] sm:$0xff]
        %v361 = vld [vmem:[#allocation2 + $0x100] sm:$0xff]
        %v362 = vld [vmem:[#allocation2 + $0x108] sm:$0xff]
        %v363 = vld [vmem:[#allocation2 + $0x110] sm:$0xff]
        %v364 = vld [vmem:[#allocation2 + $0x118] sm:$0xff]
        %v365 = vld [vmem:[#allocation2 + $0x120] sm:$0xff]
        %v366 = vld [vmem:[#allocation2 + $0x128] sm:$0xff]
        %v367 = vld [vmem:[#allocation2 + $0x130] sm:$0xff]
        %v368 = vld [vmem:[#allocation2 + $0x138] sm:$0xff]
        %v369 = vld [vmem:[#allocation2 + $0x140] sm:$0xff]
        %v370 = vld [vmem:[#allocation2 + $0x148] sm:$0xff]
        %v371 = vld [vmem:[#allocation2 + $0x150] sm:$0xff]
        %v372 = vld [vmem:[#allocation2 + $0x158] sm:$0xff]
        %v373 = vld [vmem:[#allocation2 + $0x160] sm:$0xff]
        %v374 = vld [vmem:[#allocation2 + $0x168] sm:$0xff]
        %v375 = vld [vmem:[#allocation2 + $0x170] sm:$0xff]
        %v376 = vld [vmem:[#allocation2 + $0x178] sm:$0xff]
        %v377 = vld [vmem:[#allocation2 + $0x180] sm:$0xff]
        %v378 = vld [vmem:[#allocation2 + $0x188] sm:$0xff]
        %v379 = vld [vmem:[#allocation2 + $0x190] sm:$0xff]
        %v380 = vld [vmem:[#allocation2 + $0x198] sm:$0xff]
        %v381 = vld [vmem:[#allocation2 + $0x1a0] sm:$0xff]
        %v382 = vld [vmem:[#allocation2 + $0x1a8] sm:$0xff]
        %v383 = vld [vmem:[#allocation2 + $0x1b0] sm:$0xff]
        %v384 = vld [vmem:[#allocation2 + $0x1b8] sm:$0xff]
        %v385 = vld [vmem:[#allocation2 + $0x1c0] sm:$0xff]
        %v386 = vld [vmem:[#allocation2 + $0x1c8] sm:$0xff]
        %v387 = vld [vmem:[#allocation2 + $0x1d0] sm:$0xff]
        %v388 = vld [vmem:[#allocation2 + $0x1d8] sm:$0xff]
        %v389 = vld [vmem:[#allocation2 + $0x1e0] sm:$0xff]
        %v390 = vld [vmem:[#allocation2 + $0x1e8] sm:$0xff]
        %v391 = vld [vmem:[#allocation2 + $0x1f0] sm:$0xff]
        %v392 = vld [vmem:[#allocation2 + $0x1f8] sm:$0xff]
        %v393 = vld [vmem:[#allocation2 + $0x200] sm:$0xff]
        %v394 = vld [vmem:[#allocation2 + $0x208] sm:$0xff]
        %v395 = vld [vmem:[#allocation2 + $0x210] sm:$0xff]
        %v396 = vld [vmem:[#allocation2 + $0x218] sm:$0xff]
        %v397 = vld [vmem:[#allocation2 + $0x220] sm:$0xff]
        %v398 = vld [vmem:[#allocation2 + $0x228] sm:$0xff]
        %v399 = vld [vmem:[#allocation2 + $0x230] sm:$0xff]
        %v400 = vld [vmem:[#allocation2 + $0x238] sm:$0xff]
        %v401 = vld [vmem:[#allocation2 + $0x240] sm:$0xff]
        %v402 = vld [vmem:[#allocation2 + $0x248] sm:$0xff]
        %v403 = vld [vmem:[#allocation2 + $0x250] sm:$0xff]
        %v404 = vld [vmem:[#allocation2 + $0x258] sm:$0xff]
        %v405 = vld [vmem:[#allocation2 + $0x260] sm:$0xff]
        %v406 = vld [vmem:[#allocation2 + $0x268] sm:$0xff]
        %v407 = vld [vmem:[#allocation2 + $0x270] sm:$0xff]
        %v408 = vld [vmem:[#allocation2 + $0x278] sm:$0xff]
        %v409 = vld [vmem:[#allocation2 + $0x280] sm:$0xff]
        %v410 = vld [vmem:[#allocation2 + $0x288] sm:$0xff]
        %v411 = vld [vmem:[#allocation2 + $0x290] sm:$0xff]
        %v412 = vld [vmem:[#allocation2 + $0x298] sm:$0xff]
        %v413 = vld [vmem:[#allocation2 + $0x2a0] sm:$0xff]
        %v414 = vld [vmem:[#allocation2 + $0x2a8] sm:$0xff]
        %v415 = vld [vmem:[#allocation2 + $0x2b0] sm:$0xff]
        %v416 = vld [vmem:[#allocation2 + $0x2b8] sm:$0xff]
        %v417 = vld [vmem:[#allocation2 + $0x2c0] sm:$0xff]
        %v418 = vld [vmem:[#allocation2 + $0x2c8] sm:$0xff]
        %v419 = vld [vmem:[#allocation2 + $0x2d0] sm:$0xff]
        %v420 = vld [vmem:[#allocation2 + $0x2d8] sm:$0xff]
        %v421 = vld [vmem:[#allocation2 + $0x2e0] sm:$0xff]
        %v422 = vld [vmem:[#allocation2 + $0x2e8] sm:$0xff]
        %v423 = vld [vmem:[#allocation2 + $0x2f0] sm:$0xff]
        %v424 = vld [vmem:[#allocation2 + $0x2f8] sm:$0xff]
        %v425 = vld [vmem:[#allocation2 + $0x300] sm:$0xff]
        %v426 = vld [vmem:[#allocation2 + $0x308] sm:$0xff]
        %v427 = vld [vmem:[#allocation2 + $0x310] sm:$0xff]
        %v428 = vld [vmem:[#allocation2 + $0x318] sm:$0xff]
        %v429 = vld [vmem:[#allocation2 + $0x320] sm:$0xff]
        %v430 = vld [vmem:[#allocation2 + $0x328] sm:$0xff]
        %v431 = vld [vmem:[#allocation2 + $0x330] sm:$0xff]
        %v432 = vld [vmem:[#allocation2 + $0x338] sm:$0xff]
        %v433 = vld [vmem:[#allocation2 + $0x340] sm:$0xff]
        %v434 = vld [vmem:[#allocation2 + $0x348] sm:$0xff]
        %v435 = vld [vmem:[#allocation2 + $0x350] sm:$0xff]
        %v436 = vld [vmem:[#allocation2 + $0x358] sm:$0xff]
        %v437 = vld [vmem:[#allocation2 + $0x360] sm:$0xff]
        %v438 = vld [vmem:[#allocation2 + $0x368] sm:$0xff]
        %v439 = vld [vmem:[#allocation2 + $0x370] sm:$0xff]
        %v440 = vld [vmem:[#allocation2 + $0x378] sm:$0xff]
        %v441 = vld [vmem:[#allocation2 + $0x380] sm:$0xff]
        %v442 = vld [vmem:[#allocation2 + $0x388] sm:$0xff]
        %v443 = vld [vmem:[#allocation2 + $0x390] sm:$0xff]
        %v444 = vld [vmem:[#allocation2 + $0x398] sm:$0xff]
        %v445 = vld [vmem:[#allocation2 + $0x3a0] sm:$0xff]
        %v446 = vld [vmem:[#allocation2 + $0x3a8] sm:$0xff]
        %v447 = vld [vmem:[#allocation2 + $0x3b0] sm:$0xff]
        %v448 = vld [vmem:[#allocation2 + $0x3b8] sm:$0xff]
        %v449 = vld [vmem:[#allocation2 + $0x3c0] sm:$0xff]
        %v450 = vld [vmem:[#allocation2 + $0x3c8] sm:$0xff]
        %v451 = vld [vmem:[#allocation2 + $0x3d0] sm:$0xff]
        %v452 = vld [vmem:[#allocation2 + $0x3d8] sm:$0xff]
        %v453 = vld [vmem:[#allocation2 + $0x3e0] sm:$0xff]
        %v454 = vld [vmem:[#allocation2 + $0x3e8] sm:$0xff]
        %v455 = vld [vmem:[#allocation2 + $0x3f0] sm:$0xff]
        %v456 = vld [vmem:[#allocation2 + $0x3f8] sm:$0xff]
        %v457 = vpack.c.bf16 %v331, %v329
        %v458 = vpack.c.bf16 %v332, %v330
        %v459 = vpack.c.bf16 %v335, %v333
        %v460 = vpack.c.bf16 %v336, %v334
        %v461 = vpack.c.bf16 %v339, %v337
        %v462 = vpack.c.bf16 %v340, %v338
        %v463 = vpack.c.bf16 %v343, %v341
        %v464 = vpack.c.bf16 %v344, %v342
        %v465 = vpack.c.bf16 %v347, %v345
        %v466 = vpack.c.bf16 %v348, %v346
        %v467 = vpack.c.bf16 %v351, %v349
        %v468 = vpack.c.bf16 %v352, %v350
        %v469 = vpack.c.bf16 %v355, %v353
        %v470 = vpack.c.bf16 %v356, %v354
        %v471 = vpack.c.bf16 %v359, %v357
        %v472 = vpack.c.bf16 %v360, %v358
        %v473 = vpack.c.bf16 %v363, %v361
        %v474 = vpack.c.bf16 %v364, %v362
        %v475 = vpack.c.bf16 %v367, %v365
        %v476 = vpack.c.bf16 %v368, %v366
        %v477 = vpack.c.bf16 %v371, %v369
        %v478 = vpack.c.bf16 %v372, %v370
        %v479 = vpack.c.bf16 %v375, %v373
        %v480 = vpack.c.bf16 %v376, %v374
        %v481 = vpack.c.bf16 %v379, %v377
        %v482 = vpack.c.bf16 %v380, %v378
        %v483 = vpack.c.bf16 %v383, %v381
        %v484 = vpack.c.bf16 %v384, %v382
        %v485 = vpack.c.bf16 %v387, %v385
        %v486 = vpack.c.bf16 %v388, %v386
        %v487 = vpack.c.bf16 %v391, %v389
        %v488 = vpack.c.bf16 %v392, %v390
        %v489 = vpack.c.bf16 %v395, %v393
        %v490 = vpack.c.bf16 %v396, %v394
        %v491 = vpack.c.bf16 %v399, %v397
        %v492 = vpack.c.bf16 %v400, %v398
        %v493 = vpack.c.bf16 %v403, %v401
        %v494 = vpack.c.bf16 %v404, %v402
        %v495 = vpack.c.bf16 %v407, %v405
        %v496 = vpack.c.bf16 %v408, %v406
        %v497 = vpack.c.bf16 %v411, %v409
        %v498 = vpack.c.bf16 %v412, %v410
        %v499 = vpack.c.bf16 %v415, %v413
        %v500 = vpack.c.bf16 %v416, %v414
        %v501 = vpack.c.bf16 %v419, %v417
        %v502 = vpack.c.bf16 %v420, %v418
        %v503 = vpack.c.bf16 %v423, %v421
        %v504 = vpack.c.bf16 %v424, %v422
        %v505 = vpack.c.bf16 %v427, %v425
        %v506 = vpack.c.bf16 %v428, %v426
        %v507 = vpack.c.bf16 %v431, %v429
        %v508 = vpack.c.bf16 %v432, %v430
        %v509 = vpack.c.bf16 %v435, %v433
        %v510 = vpack.c.bf16 %v436, %v434
        %v511 = vpack.c.bf16 %v439, %v437
        %v512 = vpack.c.bf16 %v440, %v438
        %v513 = vpack.c.bf16 %v443, %v441
        %v514 = vpack.c.bf16 %v444, %v442
        %v515 = vpack.c.bf16 %v447, %v445
        %v516 = vpack.c.bf16 %v448, %v446
        %v517 = vpack.c.bf16 %v451, %v449
        %v518 = vpack.c.bf16 %v452, %v450
        %v519 = vpack.c.bf16 %v455, %v453
        %v520 = vpack.c.bf16 %v456, %v454
        %v521 = vld [vmem:[%s2] sm:$0x3]
        %v523 = vlaneseq
        %v524 = vshrl.u32 %v523, 7
        %v525 = vsub.s32 0, %v524
        %v526 = vrot.slane %v521, %v525
        %v527 = vlaneseq
        %v528 = vshrl.u32 %v527, 7
        %v529 = vsub.s32 1, %v528
        %v530 = vrot.slane %v521, %v529
        %533 = vmatprep.subr.bf16.mxu0 %v472
        %534 = vmatpush1.bf16.msra.mxu0 %v471
        %535 = vmatprep.subr.bf16.mxu0 %v470
        %536 = vmatpush1.bf16.msra.mxu0 %v469
        %537 = vmatprep.subr.bf16.mxu0 %v468
        %538 = vmatpush1.bf16.msra.mxu0 %v467
        %539 = vmatprep.subr.bf16.mxu0 %v466
        %540 = vmatpush1.bf16.msra.mxu0 %v465
        %541 = vmatprep.subr.bf16.mxu0 %v464
        %542 = vmatpush1.bf16.msra.mxu0 %v463
        %543 = vmatprep.subr.bf16.mxu0 %v462
        %544 = vmatpush1.bf16.msra.mxu0 %v461
        %545 = vmatprep.subr.bf16.mxu0 %v460
        %546 = vmatpush1.bf16.msra.mxu0 %v459
        %547 = vmatprep.subr.bf16.mxu0 %v458
        %548 = vmatpush1.bf16.msra.mxu0 %v457
        %549 = vmatprep.subr.bf16.mxu0 %v488
        %550 = vmatpush2.bf16.msra.mxu0 %v487
        %551 = vmatprep.subr.bf16.mxu0 %v486
        %552 = vmatpush2.bf16.msra.mxu0 %v485
        %553 = vmatprep.subr.bf16.mxu0 %v484
        %554 = vmatpush2.bf16.msra.mxu0 %v483
        %555 = vmatprep.subr.bf16.mxu0 %v482
        %556 = vmatpush2.bf16.msra.mxu0 %v481
        %557 = vmatprep.subr.bf16.mxu0 %v480
        %558 = vmatpush2.bf16.msra.mxu0 %v479
        %559 = vmatprep.subr.bf16.mxu0 %v478
        %560 = vmatpush2.bf16.msra.mxu0 %v477
        %561 = vmatprep.subr.bf16.mxu0 %v476
        %562 = vmatpush2.bf16.msra.mxu0 %v475
        %563 = vmatprep.subr.bf16.mxu0 %v474
        %564 = vmatpush2.bf16.msra.mxu0 %v473
        %565 = vmatprep.mubr.bf16.mxu0 %v326
        %566 = vmatmul.mubr.bf16.gmra.mxu0 %v325
        %v567 = vpop.f32.mrf.mxu0
        %v568 = vadd.f32 %v526, %v567
        %v569 = vpop.f32.mrf.mxu0
        %v570 = vadd.f32 %v530, %v569
        %v571 = vpop.f32.mrf.mxu0
        %v572 = vpop.f32.mrf.mxu0
        %573 = vdwg.mxu0
        %574 = vmatprep.subr.bf16.mxu0 %v504
        %575 = vmatpush1.bf16.msra.mxu0 %v503
        %576 = vmatprep.subr.bf16.mxu0 %v502
        %577 = vmatpush1.bf16.msra.mxu0 %v501
        %578 = vmatprep.subr.bf16.mxu0 %v500
        %579 = vmatpush1.bf16.msra.mxu0 %v499
        %580 = vmatprep.subr.bf16.mxu0 %v498
        %581 = vmatpush1.bf16.msra.mxu0 %v497
        %582 = vmatprep.subr.bf16.mxu0 %v496
        %583 = vmatpush1.bf16.msra.mxu0 %v495
        %584 = vmatprep.subr.bf16.mxu0 %v494
        %585 = vmatpush1.bf16.msra.mxu0 %v493
        %586 = vmatprep.subr.bf16.mxu0 %v492
        %587 = vmatpush1.bf16.msra.mxu0 %v491
        %588 = vmatprep.subr.bf16.mxu0 %v490
        %589 = vmatpush1.bf16.msra.mxu0 %v489
        %590 = vmatprep.subr.bf16.mxu0 %v520
        %591 = vmatpush2.bf16.msra.mxu0 %v519
        %592 = vmatprep.subr.bf16.mxu0 %v518
        %593 = vmatpush2.bf16.msra.mxu0 %v517
        %594 = vmatprep.subr.bf16.mxu0 %v516
        %595 = vmatpush2.bf16.msra.mxu0 %v515
        %596 = vmatprep.subr.bf16.mxu0 %v514
        %597 = vmatpush2.bf16.msra.mxu0 %v513
        %598 = vmatprep.subr.bf16.mxu0 %v512
        %599 = vmatpush2.bf16.msra.mxu0 %v511
        %600 = vmatprep.subr.bf16.mxu0 %v510
        %601 = vmatpush2.bf16.msra.mxu0 %v509
        %602 = vmatprep.subr.bf16.mxu0 %v508
        %603 = vmatpush2.bf16.msra.mxu0 %v507
        %604 = vmatprep.subr.bf16.mxu0 %v506
        %605 = vmatpush2.bf16.msra.mxu0 %v505
        %606 = vmatprep.mubr.bf16.mxu0 %v328
        %607 = vmatmul.mubr.bf16.gmra.mxu0 %v327
        %v608 = vpop.f32.mrf.mxu0
        %v609 = vadd.f32 %v568, %v608
        %v610 = vpop.f32.mrf.mxu0
        %v611 = vadd.f32 %v570, %v610
        %v612 = vpop.f32.mrf.mxu0
        %v613 = vpop.f32.mrf.mxu0
        %614 = vdwg.mxu0
        %v615 = vmax.f32 %v609, 0.0
        %v616 = vmax.f32 %v611, 0.0
        %v617 = vld [vmem:[%s3] sm:$0xff]
        %v618 = vld [vmem:[%s3 + $0x8] sm:$0xff]
        %v619 = vld [vmem:[%s3 + $0x10] sm:$0xff]
        %v620 = vld [vmem:[%s3 + $0x18] sm:$0xff]
        %v621 = vld [vmem:[%s3 + $0x20] sm:$0xff]
        %v622 = vld [vmem:[%s3 + $0x28] sm:$0xff]
        %v623 = vld [vmem:[%s3 + $0x30] sm:$0xff]
        %v624 = vld [vmem:[%s3 + $0x38] sm:$0xff]
        %v625 = vld [vmem:[%s3 + $0x40] sm:$0xff]
        %v626 = vld [vmem:[%s3 + $0x48] sm:$0xff]
        %v627 = vld [vmem:[%s3 + $0x50] sm:$0xff]
        %v628 = vld [vmem:[%s3 + $0x58] sm:$0xff]
        %v629 = vld [vmem:[%s3 + $0x60] sm:$0xff]
        %v630 = vld [vmem:[%s3 + $0x68] sm:$0xff]
        %v631 = vld [vmem:[%s3 + $0x70] sm:$0xff]
        %v632 = vld [vmem:[%s3 + $0x78] sm:$0xff]
        %v633 = vld [vmem:[%s3 + $0x80] sm:$0xff]
        %v634 = vld [vmem:[%s3 + $0x88] sm:$0xff]
        %v635 = vld [vmem:[%s3 + $0x90] sm:$0xff]
        %v636 = vld [vmem:[%s3 + $0x98] sm:$0xff]
        %v637 = vld [vmem:[%s3 + $0xa0] sm:$0xff]
        %v638 = vld [vmem:[%s3 + $0xa8] sm:$0xff]
        %v639 = vld [vmem:[%s3 + $0xb0] sm:$0xff]
        %v640 = vld [vmem:[%s3 + $0xb8] sm:$0xff]
        %v641 = vld [vmem:[%s3 + $0xc0] sm:$0xff]
        %v642 = vld [vmem:[%s3 + $0xc8] sm:$0xff]
        %v643 = vld [vmem:[%s3 + $0xd0] sm:$0xff]
        %v644 = vld [vmem:[%s3 + $0xd8] sm:$0xff]
        %v645 = vld [vmem:[%s3 + $0xe0] sm:$0xff]
        %v646 = vld [vmem:[%s3 + $0xe8] sm:$0xff]
        %v647 = vld [vmem:[%s3 + $0xf0] sm:$0xff]
        %v648 = vld [vmem:[%s3 + $0xf8] sm:$0xff]
        %v649 = vpack.c.bf16 %v618, %v617
        %v650 = vpack.c.bf16 %v620, %v619
        %v651 = vpack.c.bf16 %v622, %v621
        %v652 = vpack.c.bf16 %v624, %v623
        %v653 = vpack.c.bf16 %v626, %v625
        %v654 = vpack.c.bf16 %v628, %v627
        %v655 = vpack.c.bf16 %v630, %v629
        %v656 = vpack.c.bf16 %v632, %v631
        %v657 = vpack.c.bf16 %v634, %v633
        %v658 = vpack.c.bf16 %v636, %v635
        %v659 = vpack.c.bf16 %v638, %v637
        %v660 = vpack.c.bf16 %v640, %v639
        %v661 = vpack.c.bf16 %v642, %v641
        %v662 = vpack.c.bf16 %v644, %v643
        %v663 = vpack.c.bf16 %v646, %v645
        %v664 = vpack.c.bf16 %v648, %v647
        %v665 = vpack.c.bf16 %v615, %v615
        %v666 = vpack.c.bf16 %v616, %v616
        %v667 = vld [vmem:[%s4] sm:$0x1]
        %v669 = vlaneseq
        %v670 = vshrl.u32 %v669, 7
        %v671 = vsub.s32 0, %v670
        %v672 = vrot.slane %v667, %v671
        %674 = vmatprep.subr.bf16.mxu0 0
        %675 = vmatpush1.bf16.msra.mxu0 %v656
        %676 = vmatprep.subr.bf16.mxu0 0
        %677 = vmatpush1.bf16.msra.mxu0 %v655
        %678 = vmatprep.subr.bf16.mxu0 0
        %679 = vmatpush1.bf16.msra.mxu0 %v654
        %680 = vmatprep.subr.bf16.mxu0 0
        %681 = vmatpush1.bf16.msra.mxu0 %v653
        %682 = vmatprep.subr.bf16.mxu0 0
        %683 = vmatpush1.bf16.msra.mxu0 %v652
        %684 = vmatprep.subr.bf16.mxu0 0
        %685 = vmatpush1.bf16.msra.mxu0 %v651
        %686 = vmatprep.subr.bf16.mxu0 0
        %687 = vmatpush1.bf16.msra.mxu0 %v650
        %688 = vmatprep.subr.bf16.mxu0 0
        %689 = vmatpush1.bf16.msra.mxu0 %v649
        %690 = vmatprep.subr.bf16.mxu0 0
        %691 = vmatpush2.bf16.msra.mxu0 %v664
        %692 = vmatprep.subr.bf16.mxu0 0
        %693 = vmatpush2.bf16.msra.mxu0 %v663
        %694 = vmatprep.subr.bf16.mxu0 0
        %695 = vmatpush2.bf16.msra.mxu0 %v662
        %696 = vmatprep.subr.bf16.mxu0 0
        %697 = vmatpush2.bf16.msra.mxu0 %v661
        %698 = vmatprep.subr.bf16.mxu0 0
        %699 = vmatpush2.bf16.msra.mxu0 %v660
        %700 = vmatprep.subr.bf16.mxu0 0
        %701 = vmatpush2.bf16.msra.mxu0 %v659
        %702 = vmatprep.subr.bf16.mxu0 0
        %703 = vmatpush2.bf16.msra.mxu0 %v658
        %704 = vmatprep.subr.bf16.mxu0 0
        %705 = vmatpush2.bf16.msra.mxu0 %v657
        %706 = vmatprep.mubr.bf16.mxu0 %v666
        %707 = vmatmul.mubr.bf16.gmra.mxu0 %v665
        %v708 = vpop.f32.mrf.mxu0
        %v709 = vadd.f32 %v672, %v708
        %v710 = vpop.f32.mrf.mxu0
        %v711 = vpop.f32.mrf.mxu0
        %v712 = vpop.f32.mrf.mxu0
        %713 = vdwg.mxu0
        %v714 = vmax.f32 %v709, 0.0
        %v715 = vld [vmem:[%s319] sm:$0xff]
        %v716 = vadd.f32 %v715, 1e-20
        %v717 = vlog2.pop %v716
        %v718 = vmul.f32 %v717, 0.6931472
        %v719 = vsub.f32 0.0, %v718
        %v720 = vadd.f32 %v719, 1e-20
        %v721 = vlog2.pop %v720
        %v722 = vmul.f32 %v721, 0.6931472
        %v723 = vsub.f32 0.0, %v722
        %v724 = vadd.f32 %v714, %v723
        %v725 = vmul.f32 %v724, 2.0
        %vm726 = vcmask 130048
        %v727 = vsel %vm726, %v725, -inf
        %728 = vmax.xlane.f32.xlu0 %v727
        %v729 = vpop.xlane.xlu0 %728
        %v730 = vsub.f32 %v725, %v729
        %v731 = vmul.f32 %v730, 1.442695
        %v732 = vpow.pop %v731
        %v733 = vsel %vm726, %v732, 0.0
        %734 = vadd.xlane.f32.xlu0 %v733
        %v735 = vpop.xlane.xlu0 %734
        %v736 = vrcp.pop %v735
        %v737 = vmul.f32 %v732, %v736
        %738 = vst.msk [vmem:[%s303] sm:$0xff] %vm726, %v737
        %v739 = vsel %vm726, %v714, -inf
        %740 = vmax.xlane.f32.xlu0 %v739
        %v741 = vpop.xlane.xlu0 %740
        %v742 = vsub.f32 %v714, %v741
        %v743 = vmul.f32 %v742, 1.442695
        %v744 = vpow.pop %v743
        %v745 = vsel %vm726, %v744, 0.0
        %746 = vadd.xlane.f32.xlu0 %v745
        %v747 = vpop.xlane.xlu0 %746
        %v748 = vrcp.pop %v747
        %v749 = vmul.f32 %v744, %v748
        %750 = vst.msk [vmem:[%s310] sm:$0xff] %vm726, %v749
        %s751 = sand.u32 %s170, 1
        %s752 = scalar_lea.sflag [#allocation4], %s751
        %s753 = sand.u32 %s170, 1
        %s754 = smul.addr %s753, 8
        %s755 = scalar_lea.vmem [#allocation5], %s754
        %s756 = sand.u32 %s196, 1
        %s757 = scalar_lea.sflag [#allocation7], %s756
        %s758 = sand.u32 %s196, 1
        %s759 = smul.addr %s758, 8
        %s760 = scalar_lea.vmem [#allocation6], %s759
        // Predicated region
        $region49: #{tpu_custom_call.1} parent=43 // pred_check
          %p761 = pneg %p180
        $region50: #{tpu_custom_call.1} parent=43 // pred_check_branch
          %763 = sbr.rel (%p761) target = $region52
        $region51: #{tpu_custom_call.1} parent=43 // pred_region
          %s765 = ssub.s32 128, 128
          %766 = vsyncadd %s752, %s765
          %s767 = smul.addr %s26, 128
          %s768 = scalar_lea.hbm %s6, %s767
          %s770 = sshll.u32 %s755, 4
          %s771 = int_to_ptr.vmem [resolvable:$true] %s770
          %773 = dma.vmem_to_hbm [thread:$0]  %s771, 128, %s768, %s752
        $region52: #{tpu_custom_call.1} parent=43 // pred_fallthru
          _
        // Predicated region
        $region53: #{tpu_custom_call.1} parent=43 // pred_check
          %p774 = pneg %p206
        $region54: #{tpu_custom_call.1} parent=43 // pred_check_branch
          %776 = sbr.rel (%p774) target = $region56
        $region55: #{tpu_custom_call.1} parent=43 // pred_region
          %s778 = ssub.s32 128, 128
          %779 = vsyncadd %s757, %s778
          %s780 = smul.addr %s26, 128
          %s781 = scalar_lea.hbm %s7, %s780
          %s783 = sshll.u32 %s760, 4
          %s784 = int_to_ptr.vmem [resolvable:$true] %s783
          %786 = dma.vmem_to_hbm [thread:$0]  %s784, 128, %s781, %s757
        $region56: #{tpu_custom_call.1} parent=43 // pred_fallthru
          _
      $region44: #{tpu_custom_call.1} parent=5 // pred_fallthru
        _
      %p787 = scmp.le.s32.totalorder 2, %s21
      // Predicated region
      $region57: #{tpu_custom_call.1} parent=5 // pred_check
        %p788 = pneg %p787
      $region58: #{tpu_custom_call.1} parent=5 // pred_check_branch
        %790 = sbr.rel (%p788) target = $region60
      $region59: #{tpu_custom_call.1} parent=5 // pred_region
        %s791 = ssub.s32 %s21, 2
        // Predicated region
        $region61: #{tpu_custom_call.1} parent=59 // pred_check
          %p792 = pneg %p186
        $region62: #{tpu_custom_call.1} parent=59 // pred_check_branch
          %794 = sbr.rel (%p792) target = $region64
        $region63: #{tpu_custom_call.1} parent=59 // pred_region
          %s795 = sand.u32 %s171, 1
          %s796 = scalar_lea.sflag [#allocation4], %s795
          %s797 = sand.u32 %s171, 1
          %s798 = smul.addr %s797, 8
          %s799 = scalar_lea.vmem [#allocation5], %s798
          %800 = dma.done %s796, 128
        $region64: #{tpu_custom_call.1} parent=59 // pred_fallthru
          _
        // Predicated region
        $region65: #{tpu_custom_call.1} parent=59 // pred_check
          %p801 = pneg %p212
        $region66: #{tpu_custom_call.1} parent=59 // pred_check_branch
          %803 = sbr.rel (%p801) target = $region68
        $region67: #{tpu_custom_call.1} parent=59 // pred_region
          %s804 = sand.u32 %s197, 1
          %s805 = scalar_lea.sflag [#allocation7], %s804
          %s806 = sand.u32 %s197, 1
          %s807 = smul.addr %s806, 8
          %s808 = scalar_lea.vmem [#allocation6], %s807
          %809 = dma.done %s805, 128
        $region68: #{tpu_custom_call.1} parent=59 // pred_fallthru
          _
      $region60: #{tpu_custom_call.1} parent=5 // pred_fallthru
        _
    $region6: #{tpu_custom_call.1} parent=1 // loop_footer
      %s25 = sadd.s32 1, %s21
    $region7: #{tpu_custom_call.1} parent=1 // loop_footer_branch
      %20 = sbr.rel target = $region3
    $region8: #{tpu_custom_call.1} parent=1 // loop_exit
      _
    %810 = vsyncpa [#allocation3], 1
    %s811 = scalar_lea.sflag [#allocation3], 1
    %812 = vsyncpa %s811, 1
    %813 = vsyncpa [#allocation4], 1
    %s814 = scalar_lea.sflag [#allocation4], 1
    %815 = vsyncpa %s814, 1
    %816 = vsyncpa [#allocation7], 1
    %s817 = scalar_lea.sflag [#allocation7], 1
    %818 = vsyncpa %s817, 1

</llo_original>
